<compile_context>
chip_gen: v7x
topology: tpu7x:2x2x1
jax: 0.10.0
libtpu: 0.0.40
codegen_flags: <defaults>
</compile_context>

<pallas_src>
import functools
import math

import numpy as np
import jax
import jax.numpy as jnp
from jax import lax
from jax.experimental import pallas as pl
from jax.experimental.pallas import tpu as pltpu


# ----------------------------------------------------------------------------------------
# fused kernel: selector + bias lookup + cross-batch attention, all VMEM-resident
# ----------------------------------------------------------------------------------------
def _fused_kernel(x_ref, bias_tbl_ref, ws_ref, gamma_ref, beta_ref,
                  wqkv_ref, bqkv_ref, wskip_ref, bskip_ref, out_ref, *, scale):
    f32, bf16 = jnp.float32, jnp.bfloat16
    x = x_ref[...]                                   # (B, N, D) f32 -- the ONLY read of x
    B, N, D = x.shape
    Dqp = wskip_ref.shape[1]

    gamma = gamma_ref[...]                           # (1, D)
    beta = beta_ref[...]

    def layer_norm(t):                               # f32 statistics, eps = 1e-5 (torch)
        mu = jnp.mean(t, axis=-1, keepdims=True)
        var = jnp.mean(jnp.square(t - mu), axis=-1, keepdims=True)
        return (t - mu) * lax.rsqrt(var + 1e-5) * gamma + beta

    # ---- relevant-token selector (eval mode: argmax, f32-exact).  The scalar scorer
    # bias shifts every logit by a constant -> does not change the argmax -> dropped.
    logits = jnp.einsum('bnd,od->bno', x, ws_ref[...],
                        preferred_element_type=f32)[..., 0]                  # (B, N)
    iota = lax.broadcasted_iota(jnp.int32, (B, N), 1)
    best = jnp.max(logits, axis=-1, keepdims=True)
    arg = jnp.min(jnp.where(logits == best, iota, N),
                  axis=-1, keepdims=True)                                    # first occurrence
    onehot = (iota == arg).astype(f32)                                       # (B, N)

    # Selected-token gather AND positional-bias row gather reuse the same one-hot as MXU
    # contractions (no dynamic indexing / gather lowering needed inside the kernel).
    sel = jnp.einsum('bqn,bnd->bqd', onehot[:, None, :], x,
                     preferred_element_type=f32)[:, 0, :]                    # (B, D) exact
    bias_rows = jnp.dot(onehot, bias_tbl_ref[...],
                        preferred_element_type=f32)                          # (B, N) = tbl[idx]

    # ---- fused QK / V projection: one (B*N, D) @ (D, 2*Dqp) bf16 matmul with f32
    # accumulation, sliced at the lane-aligned 128 boundary into key / value.
    xn = layer_norm(x.reshape(B * N, D)).astype(bf16)
    kv = jnp.dot(xn, wqkv_ref[...], preferred_element_type=f32) + bqkv_ref[...]
    key = kv[:, :Dqp].reshape(B, N, Dqp)
    value = kv[:, Dqp:].reshape(B, N, Dqp)

    # query / skip for the selected token (tiny (B, D) matmuls, bf16 operands)
    q = jnp.dot(layer_norm(sel).astype(bf16), wqkv_ref[:, :Dqp],
                preferred_element_type=f32) + bqkv_ref[:, :Dqp]              # (B, Dqp)
    q = (q * scale).astype(bf16)                     # fold 1/sqrt(qkv_dim) into the query
    skip = jnp.dot(sel.astype(bf16), wskip_ref[...],
                   preferred_element_type=f32) + bskip_ref[...]              # (B, Dqp)

    # ---- cross-batch attention: s[i, j, n] = <key[i, n], q[j]> + bias[j, n].
    # One-time ~1 KiB replication of q (there is no grid loop in this fused kernel), so
    # the score einsum is a clean batched MXU contraction with no operand transposes.
    q_b = jnp.broadcast_to(q[None], (B, B, Dqp))
    s = jnp.einsum('ijq,inq->ijn', q_b, key.astype(bf16),
                   preferred_element_type=f32)                               # (B, B, N)
    s = s + bias_rows[None, :, :]                                            # bias indexed by j

    # full-N softmax (no online-softmax scratch needed; everything is resident)
    m = jnp.max(s, axis=-1, keepdims=True)
    p = jnp.exp(s - m)
    l = jnp.sum(p, axis=-1, keepdims=True)
    y = jnp.einsum('ijn,inq->ijq', p.astype(bf16), value.astype(bf16),
                   preferred_element_type=f32)
    y = y * pl.reciprocal(l, approx=False) + skip[None, :, :]
    out_ref[...] = jnp.maximum(y, 0.0)
    # TODO(synk): training-mode Categorical sampling and Dropout(0.5) are stochastic;
    # this kernel implements eval semantics (argmax selection, identity dropout).


# ----------------------------------------------------------------------------------------
# wrapper
# ----------------------------------------------------------------------------------------
def _vmem_limit_bytes():
    """Per-generation VMEM budget (v7x: 64 MiB physical -> ~48 MiB; v5e/v6e: 128 -> 96)."""
    try:
        cap = int(pltpu.get_tpu_info().vmem_capacity_bytes)
    except Exception:
        cap = 128 * 1024 * 1024
    return max(32 * 1024 * 1024, min(cap - 16 * 1024 * 1024, 96 * 1024 * 1024))


def prepare_params(params):
    """One-time parameter preprocessing, hoisted out of the per-call jit path:
    qkv-dim zero-padding to a lane-dense multiple of 128, f32->bf16 weight casts,
    QK/V weight fusion, and the dense positional-bias table (parameter-only, O(N^2),
    a few KiB at window-attention sizes)."""
    Dq = params['w_qk'].shape[1]
    Dqp = max(128, ((Dq + 127) // 128) * 128)
    pad = Dqp - Dq
    padw = lambda w: jnp.pad(w.astype(jnp.float32), ((0, 0), (0, pad)))
    padb = lambda b: jnp.pad(b.astype(jnp.float32), ((0, 0), (0, pad)))
    return dict(
        w_scorer=params['w_scorer'].astype(jnp.float32),
        ln_gamma=params['ln_gamma'].astype(jnp.float32),
        ln_beta=params['ln_beta'].astype(jnp.float32),
        w_qkv=jnp.concatenate([padw(params['w_qk']), padw(params['w_v'])],
                              axis=1).astype(jnp.bfloat16),
        b_qkv=jnp.concatenate([padb(params['b_qk']), padb(params['b_v'])], axis=1),
        w_skip=padw(params['w_skip']).astype(jnp.bfloat16),
        b_skip=padb(params['b_skip']),
        bias_table=params['unique_bias'].astype(jnp.float32)[params['relative_indexes']],
        w_fc=params['w_fc'].astype(jnp.float32),   # kept unpadded: Dq recovered from shape
        b_fc=params['b_fc'].astype(jnp.float32),
    )


def relevant_token_attention(x, params):
    """Pallas forward for RelevantTokenAttention (eval mode). `params` = prepare_params(...)."""
    if x.ndim == 4:
        x = x.reshape(x.shape[0], -1, x.shape[-1])
    x = x.astype(jnp.float32)                      # single HBM stream of x, one dtype
    B, N, D = x.shape
    Dq = params['w_fc'].shape[0]
    Dqp = params['w_skip'].shape[1]
    assert params['bias_table'].shape == (N, N)

    limit = _vmem_limit_bytes()
    bytes_x = 4 * B * N * D
    bytes_tbl = 4 * N * N
    bytes_w = 2 * D * 3 * Dqp + 4 * 3 * Dqp + 4 * 3 * D
    bytes_out = 4 * B * B * Dqp
    bytes_tmp = 4 * B * N * (D + 2 * Dqp) + 4 * B * B * (N + Dqp)   # xn, kv, scores, acc
    if 2 * (bytes_x + bytes_tbl + bytes_w + bytes_out + bytes_tmp) > limit:
        # TODO(synk): tiled two-phase fallback (selector pass + online-softmax attention
        # pass) for inputs that do not fit VMEM; not needed at window-attention sizes.
        raise NotImplementedError("input too large for the fused VMEM-resident kernel")

    vmem = pl.BlockSpec(memory_space=pltpu.MemorySpace.VMEM)
    cost = pl.CostEstimate(
        flops=2 * B * N * D * (1 + 3 * Dqp) + 4 * B * B * N * Dqp,
        transcendentals=B * B * N,
        bytes_accessed=bytes_x + bytes_tbl + bytes_w + bytes_out,
    )
    y = pl.pallas_call(
        functools.partial(_fused_kernel, scale=1.0 / math.sqrt(Dq)),
        out_shape=jax.ShapeDtypeStruct((B, B, Dqp), jnp.float32),   # lane-dense (128) output
        in_specs=[vmem] * 9,
        out_specs=vmem,
        compiler_params=pltpu.CompilerParams(vmem_limit_bytes=limit),
        cost_estimate=cost,
    )(x, params['bias_table'], params['w_scorer'], params['ln_gamma'], params['ln_beta'],
      params['w_qkv'], params['b_qkv'], params['w_skip'], params['b_skip'])

    # tiny final Linear(qkv_dim -> 2) runs in XLA on the sliced result so the kernel
    # output stays lane-dense.
    out = jnp.einsum('ijq,qo->ijo', y[..., :Dq], params['w_fc']) + params['b_fc']
    if out.shape[1] == 1:              # torch .squeeze(1): only collapses when B == 1
        out = jnp.squeeze(out, axis=1)
    return out


# ----------------------------------------------------------------------------------------
# parameters + pure-JAX reference (for validation)
# ----------------------------------------------------------------------------------------
def init_params(key, window_x, window_y, token_dim, qkv_dim):
    N = window_x * window_y
    ii, jj = np.meshgrid(np.arange(window_x), np.arange(window_y), indexing='ij')
    indices = np.stack([ii, jj], axis=-1).reshape(-1, 2)
    rel = (indices[:, None, :] - indices[None, :, :]).reshape(-1, 2)
    uniq, inv = np.unique(rel, axis=0, return_inverse=True)
    relative_indexes = jnp.asarray(inv.reshape(N, N), dtype=jnp.int32)

    ks = jax.random.split(key, 13)
    rnd = lambda k, shape, s=0.05: s * jax.random.normal(k, shape, jnp.float32)
    return dict(
        relative_indexes=relative_indexes,
        unique_bias=rnd(ks[0], (uniq.shape[0],), 0.1),
        w_scorer=rnd(ks[1], (1, token_dim)),
        b_scorer=rnd(ks[2], (1, 1)),
        ln_gamma=1.0 + rnd(ks[3], (1, token_dim)),
        ln_beta=rnd(ks[4], (1, token_dim)),
        w_qk=rnd(ks[5], (token_dim, qkv_dim)),
        b_qk=rnd(ks[6], (1, qkv_dim)),
        w_v=rnd(ks[7], (token_dim, qkv_dim)),
        b_v=rnd(ks[8], (1, qkv_dim)),
        w_skip=rnd(ks[9], (token_dim, qkv_dim)),
        b_skip=rnd(ks[10], (1, qkv_dim)),
        w_fc=rnd(ks[11], (qkv_dim, 2)),
        b_fc=rnd(ks[12], (1, 2)),
    )


def _reference_forward(x, params):
    """Pure-JAX eval-mode reference (f32, highest matmul precision)."""
    with jax.default_matmul_precision("highest"):
        if x.ndim == 4:
            x = x.reshape(x.shape[0], -1, x.shape[-1])
        x = x.astype(jnp.float32)
        B, N, D = x.shape
        Dq = params['w_qk'].shape[1]

        logits = jnp.einsum('bnd,od->bno', x, params['w_scorer'])[..., 0] + params['b_scorer'][0, 0]
        idx = jnp.argmax(logits, axis=-1)
        sel = x[jnp.arange(B), idx]

        def ln(t):
            mu = t.mean(-1, keepdims=True)
            var = jnp.square(t - mu).mean(-1, keepdims=True)
            return (t - mu) / jnp.sqrt(var + 1e-5) * params['ln_gamma'] + params['ln_beta']

        xn, seln = ln(x), ln(sel)
        key = xn @ params['w_qk'] + params['b_qk']
        value = xn @ params['w_v'] + params['b_v']
        query = seln @ params['w_qk'] + params['b_qk']
        skip = sel @ params['w_skip'] + params['b_skip']

        attn = jnp.einsum('ind,jd->ijn', key, query) / math.sqrt(Dq)
        bias = params['unique_bias'][params['relative_indexes'][idx]]        # (B, N)
        attn = jax.nn.softmax(attn + bias[None, :, :], axis=-1)
        y = jax.nn.relu(jnp.einsum('ijn,ind->ijd', attn, value) + skip[None, :, :])
        out = y @ params['w_fc'] + params['b_fc']
        if out.shape[1] == 1:
            out = jnp.squeeze(out, axis=1)
        return out


if __name__ == "__main__":
    window_x, window_y = 4, 4              # -> N = 16 tokens
    token_dim, qkv_dim = 32, 16
    B = 2

    root = jax.random.PRNGKey(0)
    kx, kp = jax.random.split(root)
    x = jax.random.normal(kx, (B, window_x, window_y, token_dim), jnp.float32)
    params = init_params(kp, window_x, window_y, token_dim, qkv_dim)

    prepped = prepare_params(params)        # one-time prep, hoisted out of the jitted forward
    fwd = jax.jit(relevant_token_attention)
    out = fwd(x, prepped)
    jax.block_until_ready(out)

    assert out.shape == (B, B, 2) and out.dtype == jnp.float32
    ref = _reference_forward(x, params)
    err = float(jnp.max(jnp.abs(out - ref)))
    assert bool(jnp.all(jnp.isfinite(out))) and err < 2e-2, f"max abs error vs reference: {err}"
    print("KERNEL_OK")
</pallas_src>

<mosaic_0001>
module attributes {stable_mosaic.version = 11 : i64} {
  func.func @_fused_kernel(%arg0: memref<2x16x32xf32, #tpu.memory_space<vmem>>, %arg1: memref<16x16xf32, #tpu.memory_space<vmem>>, %arg2: memref<1x32xf32, #tpu.memory_space<vmem>>, %arg3: memref<1x32xf32, #tpu.memory_space<vmem>>, %arg4: memref<1x32xf32, #tpu.memory_space<vmem>>, %arg5: memref<32x256xbf16, #tpu.memory_space<vmem>>, %arg6: memref<1x256xf32, #tpu.memory_space<vmem>>, %arg7: memref<32x128xbf16, #tpu.memory_space<vmem>>, %arg8: memref<1x128xf32, #tpu.memory_space<vmem>>, %arg9: memref<2x2x128xf32, #tpu.memory_space<vmem>>) attributes {dimension_semantics = [], scalar_prefetch = 0 : i64, scratch_operands = 0 : i64, tpu.core_type = #tpu.core_type<tc>} {
    %c0 = arith.constant 0 : index
    %c0_0 = arith.constant 0 : index
    %c0_1 = arith.constant 0 : index
    %0 = vector.load %arg0[%c0, %c0_0, %c0_1] : memref<2x16x32xf32, #tpu.memory_space<vmem>>, vector<2x16x32xf32>
    %c0_2 = arith.constant 0 : index
    %c0_3 = arith.constant 0 : index
    %1 = vector.load %arg3[%c0_2, %c0_3] : memref<1x32xf32, #tpu.memory_space<vmem>>, vector<1x32xf32>
    %c0_4 = arith.constant 0 : index
    %c0_5 = arith.constant 0 : index
    %2 = vector.load %arg4[%c0_4, %c0_5] : memref<1x32xf32, #tpu.memory_space<vmem>>, vector<1x32xf32>
    %c0_6 = arith.constant 0 : index
    %c0_7 = arith.constant 0 : index
    %3 = vector.load %arg2[%c0_6, %c0_7] : memref<1x32xf32, #tpu.memory_space<vmem>>, vector<1x32xf32>
    "tpu.trace_start"() <{level = 10 : i32, message = "bnd,od->bno"}> : () -> ()
    %cst = arith.constant dense<0.000000e+00> : vector<2x16x1xf32>
    %4 = tpu.matmul %0, %3, %cst {dimension_numbers = #tpu.dot_dimension_numbers<[2], [1], [0, 1], [0], [0, 0, 0, 1, 1, 0], [], []>} : vector<2x16x32xf32>, vector<1x32xf32>, vector<2x16x1xf32> -> vector<2x16x1xf32>
    "tpu.trace_stop"() : () -> ()
    %5 = vector.shape_cast %4 : vector<2x16x1xf32> to vector<2x16xf32>
    %6 = tpu.iota {dimensions = array<i32: 1>} : vector<2x16xi32>
    %cst_8 = arith.constant dense<0xFF800000> : vector<2xf32>
    %7 = vector.multi_reduction <maximumf>, %5, %cst_8 [1] : vector<2x16xf32> to vector<2xf32>
    %8 = vector.shape_cast %7 : vector<2xf32> to vector<2x1xf32>
    %9 = vector.broadcast %8 : vector<2x1xf32> to vector<2x16xf32>
    %10 = arith.cmpf oeq, %5, %9 : vector<2x16xf32>
    %c16_i32 = arith.constant 16 : i32
    %11 = vector.broadcast %c16_i32 : i32 to vector<2x16xi32>
    %12 = arith.select %10, %6, %11 : vector<2x16xi1>, vector<2x16xi32>
    %cst_9 = arith.constant dense<2147483647> : vector<2xi32>
    %13 = vector.multi_reduction <minsi>, %12, %cst_9 [1] : vector<2x16xi32> to vector<2xi32>
    %14 = vector.shape_cast %13 : vector<2xi32> to vector<2x1xi32>
    %15 = vector.broadcast %14 : vector<2x1xi32> to vector<2x16xi32>
    %16 = arith.cmpi eq, %6, %15 : vector<2x16xi32>
    %17 = arith.extui %16 : vector<2x16xi1> to vector<2x16xi32>
    %18 = arith.sitofp %17 : vector<2x16xi32> to vector<2x16xf32>
    %19 = vector.shape_cast %18 : vector<2x16xf32> to vector<2x1x16xf32>
    "tpu.trace_start"() <{level = 10 : i32, message = "bqn,bnd->bqd"}> : () -> ()
    %cst_10 = arith.constant dense<0.000000e+00> : vector<2x1x32xf32>
    %20 = tpu.matmul %19, %0, %cst_10 {dimension_numbers = #tpu.dot_dimension_numbers<[2], [1], [1], [2], [0, 0, 0, 1, 1, 2], [0], [0]>} : vector<2x1x16xf32>, vector<2x16x32xf32>, vector<2x1x32xf32> -> vector<2x1x32xf32>
    "tpu.trace_stop"() : () -> ()
    %21 = vector.shape_cast %20 : vector<2x1x32xf32> to vector<2x32xf32>
    %c0_11 = arith.constant 0 : index
    %c0_12 = arith.constant 0 : index
    %22 = vector.load %arg1[%c0_11, %c0_12] : memref<16x16xf32, #tpu.memory_space<vmem>>, vector<16x16xf32>
    %cst_13 = arith.constant dense<0.000000e+00> : vector<2x16xf32>
    %23 = tpu.matmul %18, %22, %cst_13 {dimension_numbers = #tpu.dot_dimension_numbers<[1], [0], [0], [1], [0, 0, 1, 1], [], []>} : vector<2x16xf32>, vector<16x16xf32>, vector<2x16xf32> -> vector<2x16xf32>
    %24 = vector.shape_cast %0 : vector<2x16x32xf32> to vector<32x32xf32>
    %cst_14 = arith.constant dense<0.000000e+00> : vector<32xf32>
    %25 = vector.multi_reduction <add>, %24, %cst_14 [1] : vector<32x32xf32> to vector<32xf32>
    %26 = vector.shape_cast %25 : vector<32xf32> to vector<32x1xf32>
    %cst_15 = arith.constant 3.200000e+01 : f32
    %27 = vector.broadcast %cst_15 : f32 to vector<32x1xf32>
    %28 = arith.divf %26, %27 : vector<32x1xf32>
    %29 = vector.broadcast %28 : vector<32x1xf32> to vector<32x32xf32>
    %30 = arith.subf %24, %29 : vector<32x32xf32>
    %31 = arith.mulf %30, %30 : vector<32x32xf32>
    %cst_16 = arith.constant dense<0.000000e+00> : vector<32xf32>
    %32 = vector.multi_reduction <add>, %31, %cst_16 [1] : vector<32x32xf32> to vector<32xf32>
    %33 = vector.shape_cast %32 : vector<32xf32> to vector<32x1xf32>
    %cst_17 = arith.constant 3.200000e+01 : f32
    %34 = vector.broadcast %cst_17 : f32 to vector<32x1xf32>
    %35 = arith.divf %33, %34 : vector<32x1xf32>
    %36 = vector.broadcast %28 : vector<32x1xf32> to vector<32x32xf32>
    %37 = arith.subf %24, %36 : vector<32x32xf32>
    %cst_18 = arith.constant 9.99999974E-6 : f32
    %38 = vector.broadcast %cst_18 : f32 to vector<32x1xf32>
    %39 = arith.addf %35, %38 : vector<32x1xf32>
    %40 = math.rsqrt %39 : vector<32x1xf32>
    %41 = vector.broadcast %40 : vector<32x1xf32> to vector<32x32xf32>
    %42 = arith.mulf %37, %41 : vector<32x32xf32>
    %43 = vector.broadcast %1 : vector<1x32xf32> to vector<32x32xf32>
    %44 = arith.mulf %42, %43 : vector<32x32xf32>
    %45 = vector.broadcast %2 : vector<1x32xf32> to vector<32x32xf32>
    %46 = arith.addf %44, %45 : vector<32x32xf32>
    %47 = arith.truncf %46 : vector<32x32xf32> to vector<32x32xbf16>
    %c0_19 = arith.constant 0 : index
    %c0_20 = arith.constant 0 : index
    %48 = vector.load %arg5[%c0_19, %c0_20] : memref<32x256xbf16, #tpu.memory_space<vmem>>, vector<32x256xbf16>
    %cst_21 = arith.constant dense<0.000000e+00> : vector<32x256xf32>
    %49 = tpu.matmul %47, %48, %cst_21 {dimension_numbers = #tpu.dot_dimension_numbers<[1], [0], [0], [1], [0, 0, 1, 1], [], []>} : vector<32x32xbf16>, vector<32x256xbf16>, vector<32x256xf32> -> vector<32x256xf32>
    %c0_22 = arith.constant 0 : index
    %c0_23 = arith.constant 0 : index
    %50 = vector.load %arg6[%c0_22, %c0_23] : memref<1x256xf32, #tpu.memory_space<vmem>>, vector<1x256xf32>
    %51 = vector.broadcast %50 : vector<1x256xf32> to vector<32x256xf32>
    %52 = arith.addf %49, %51 : vector<32x256xf32>
    %53 = vector.extract_strided_slice %52 {offsets = [0, 0], sizes = [32, 128], strides = [1, 1]} : vector<32x256xf32> to vector<32x128xf32>
    %54 = vector.shape_cast %53 : vector<32x128xf32> to vector<2x16x128xf32>
    %55 = vector.extract_strided_slice %52 {offsets = [0, 128], sizes = [32, 128], strides = [1, 1]} : vector<32x256xf32> to vector<32x128xf32>
    %56 = vector.shape_cast %55 : vector<32x128xf32> to vector<2x16x128xf32>
    %cst_24 = arith.constant dense<0.000000e+00> : vector<2xf32>
    %57 = vector.multi_reduction <add>, %21, %cst_24 [1] : vector<2x32xf32> to vector<2xf32>
    %58 = vector.shape_cast %57 : vector<2xf32> to vector<2x1xf32>
    %cst_25 = arith.constant 3.200000e+01 : f32
    %59 = vector.broadcast %cst_25 : f32 to vector<2x1xf32>
    %60 = arith.divf %58, %59 : vector<2x1xf32>
    %61 = vector.broadcast %60 : vector<2x1xf32> to vector<2x32xf32>
    %62 = arith.subf %21, %61 : vector<2x32xf32>
    %63 = arith.mulf %62, %62 : vector<2x32xf32>
    %cst_26 = arith.constant dense<0.000000e+00> : vector<2xf32>
    %64 = vector.multi_reduction <add>, %63, %cst_26 [1] : vector<2x32xf32> to vector<2xf32>
    %65 = vector.shape_cast %64 : vector<2xf32> to vector<2x1xf32>
    %cst_27 = arith.constant 3.200000e+01 : f32
    %66 = vector.broadcast %cst_27 : f32 to vector<2x1xf32>
    %67 = arith.divf %65, %66 : vector<2x1xf32>
    %68 = vector.broadcast %60 : vector<2x1xf32> to vector<2x32xf32>
    %69 = arith.subf %21, %68 : vector<2x32xf32>
    %cst_28 = arith.constant 9.99999974E-6 : f32
    %70 = vector.broadcast %cst_28 : f32 to vector<2x1xf32>
    %71 = arith.addf %67, %70 : vector<2x1xf32>
    %72 = math.rsqrt %71 : vector<2x1xf32>
    %73 = vector.broadcast %72 : vector<2x1xf32> to vector<2x32xf32>
    %74 = arith.mulf %69, %73 : vector<2x32xf32>
    %75 = vector.broadcast %1 : vector<1x32xf32> to vector<2x32xf32>
    %76 = arith.mulf %74, %75 : vector<2x32xf32>
    %77 = vector.broadcast %2 : vector<1x32xf32> to vector<2x32xf32>
    %78 = arith.addf %76, %77 : vector<2x32xf32>
    %79 = arith.truncf %78 : vector<2x32xf32> to vector<2x32xbf16>
    %c0_29 = arith.constant 0 : index
    %c0_30 = arith.constant 0 : index
    %80 = vector.load %arg5[%c0_29, %c0_30] : memref<32x256xbf16, #tpu.memory_space<vmem>>, vector<32x128xbf16>
    %cst_31 = arith.constant dense<0.000000e+00> : vector<2x128xf32>
    %81 = tpu.matmul %79, %80, %cst_31 {dimension_numbers = #tpu.dot_dimension_numbers<[1], [0], [0], [1], [0, 0, 1, 1], [], []>} : vector<2x32xbf16>, vector<32x128xbf16>, vector<2x128xf32> -> vector<2x128xf32>
    %c0_32 = arith.constant 0 : index
    %c0_33 = arith.constant 0 : index
    %82 = vector.load %arg6[%c0_32, %c0_33] : memref<1x256xf32, #tpu.memory_space<vmem>>, vector<1x128xf32>
    %83 = vector.broadcast %82 : vector<1x128xf32> to vector<2x128xf32>
    %84 = arith.addf %81, %83 : vector<2x128xf32>
    %cst_34 = arith.constant 2.500000e-01 : f32
    %85 = vector.broadcast %cst_34 : f32 to vector<2x128xf32>
    %86 = arith.mulf %84, %85 : vector<2x128xf32>
    %87 = arith.truncf %86 : vector<2x128xf32> to vector<2x128xbf16>
    %88 = arith.truncf %21 : vector<2x32xf32> to vector<2x32xbf16>
    %c0_35 = arith.constant 0 : index
    %c0_36 = arith.constant 0 : index
    %89 = vector.load %arg7[%c0_35, %c0_36] : memref<32x128xbf16, #tpu.memory_space<vmem>>, vector<32x128xbf16>
    %cst_37 = arith.constant dense<0.000000e+00> : vector<2x128xf32>
    %90 = tpu.matmul %88, %89, %cst_37 {dimension_numbers = #tpu.dot_dimension_numbers<[1], [0], [0], [1], [0, 0, 1, 1], [], []>} : vector<2x32xbf16>, vector<32x128xbf16>, vector<2x128xf32> -> vector<2x128xf32>
    %c0_38 = arith.constant 0 : index
    %c0_39 = arith.constant 0 : index
    %91 = vector.load %arg8[%c0_38, %c0_39] : memref<1x128xf32, #tpu.memory_space<vmem>>, vector<1x128xf32>
    %92 = vector.broadcast %91 : vector<1x128xf32> to vector<2x128xf32>
    %93 = arith.addf %90, %92 : vector<2x128xf32>
    %94 = vector.shape_cast %87 : vector<2x128xbf16> to vector<1x2x128xbf16>
    %95 = vector.shape_cast %94 : vector<1x2x128xbf16> to vector<1x2x128xbf16>
    %96 = vector.broadcast %95 : vector<1x2x128xbf16> to vector<2x2x128xbf16>
    %97 = arith.truncf %54 : vector<2x16x128xf32> to vector<2x16x128xbf16>
    "tpu.trace_start"() <{level = 10 : i32, message = "ijq,inq->ijn"}> : () -> ()
    %cst_40 = arith.constant dense<0.000000e+00> : vector<2x2x16xf32>
    %98 = tpu.matmul %96, %97, %cst_40 {dimension_numbers = #tpu.dot_dimension_numbers<[2], [2], [1], [1], [0, 0, 0, 1, 1, 1], [0], [0]>} : vector<2x2x128xbf16>, vector<2x16x128xbf16>, vector<2x2x16xf32> -> vector<2x2x16xf32>
    "tpu.trace_stop"() : () -> ()
    %99 = vector.shape_cast %23 : vector<2x16xf32> to vector<1x2x16xf32>
    %100 = vector.broadcast %99 : vector<1x2x16xf32> to vector<2x2x16xf32>
    %101 = arith.addf %98, %100 : vector<2x2x16xf32>
    %cst_41 = arith.constant dense<0xFF800000> : vector<2x2xf32>
    %102 = vector.multi_reduction <maximumf>, %101, %cst_41 [2] : vector<2x2x16xf32> to vector<2x2xf32>
    %103 = vector.shape_cast %102 : vector<2x2xf32> to vector<2x2x1xf32>
    %104 = vector.broadcast %103 : vector<2x2x1xf32> to vector<2x2x16xf32>
    %105 = arith.subf %101, %104 : vector<2x2x16xf32>
    %106 = math.exp %105 : vector<2x2x16xf32>
    %cst_42 = arith.constant dense<0.000000e+00> : vector<2x2xf32>
    %107 = vector.multi_reduction <add>, %106, %cst_42 [2] : vector<2x2x16xf32> to vector<2x2xf32>
    %108 = vector.shape_cast %107 : vector<2x2xf32> to vector<2x2x1xf32>
    %109 = arith.truncf %106 : vector<2x2x16xf32> to vector<2x2x16xbf16>
    %110 = arith.truncf %56 : vector<2x16x128xf32> to vector<2x16x128xbf16>
    "tpu.trace_start"() <{level = 10 : i32, message = "ijn,inq->ijq"}> : () -> ()
    %cst_43 = arith.constant dense<0.000000e+00> : vector<2x2x128xf32>
    %111 = tpu.matmul %109, %110, %cst_43 {dimension_numbers = #tpu.dot_dimension_numbers<[2], [1], [1], [2], [0, 0, 0, 1, 1, 2], [0], [0]>} : vector<2x2x16xbf16>, vector<2x16x128xbf16>, vector<2x2x128xf32> -> vector<2x2x128xf32>
    "tpu.trace_stop"() : () -> ()
    %112 = tpu.reciprocal %108 : vector<2x2x1xf32> -> vector<2x2x1xf32>
    %113 = vector.broadcast %112 : vector<2x2x1xf32> to vector<2x2x128xf32>
    %114 = arith.mulf %111, %113 : vector<2x2x128xf32>
    %115 = vector.shape_cast %93 : vector<2x128xf32> to vector<1x2x128xf32>
    %116 = vector.broadcast %115 : vector<1x2x128xf32> to vector<2x2x128xf32>
    %117 = arith.addf %114, %116 : vector<2x2x128xf32>
    %cst_44 = arith.constant 0.000000e+00 : f32
    %118 = vector.broadcast %cst_44 : f32 to vector<2x2x128xf32>
    %119 = arith.maximumf %117, %118 : vector<2x2x128xf32>
    %c0_45 = arith.constant 0 : index
    %c0_46 = arith.constant 0 : index
    %c0_47 = arith.constant 0 : index
    %120 = vector.load %arg9[%c0_45, %c0_46, %c0_47] : memref<2x2x128xf32, #tpu.memory_space<vmem>>, vector<2x2x128xf32>
    tpu.vector_store %arg9[%c0_45, %c0_46, %c0_47], %119 {strides = array<i32>} : memref<2x2x128xf32, #tpu.memory_space<vmem>>, vector<2x2x128xf32>,
    return
  }
}

</mosaic_0001>

<llo_original>
// kernel: relevant_token_attention.1
$region0: #{relevant_token_attention.1}
  #allocation0 [shape = 'u32[]', space=smem, size = 0x4, offset = 0x4, fixed_abs, tag = 'smem constant byte address 0x4 - core index']
  #allocation1 [shape = 'u32[144,128]{1,0:T(1,128)}', space=vmem, size = 0x12000, scoped, tag = 'internal scratch']
  %s0 = inlined_call_operand.hbm [shape: f32[2,16,32], index: 0, kind: input, shape index: {}]
  %s1 = inlined_call_operand.hbm [shape: f32[16,16], index: 1, kind: input, shape index: {}]
  %s2 = inlined_call_operand.hbm [shape: f32[1,32], index: 2, kind: input, shape index: {}]
  %s3 = inlined_call_operand.hbm [shape: f32[1,32], index: 3, kind: input, shape index: {}]
  %s4 = inlined_call_operand.hbm [shape: f32[1,32], index: 4, kind: input, shape index: {}]
  %s5 = inlined_call_operand.hbm [shape: bf16[32,256], index: 5, kind: input, shape index: {}]
  %s6 = inlined_call_operand.hbm [shape: f32[1,256], index: 6, kind: input, shape index: {}]
  %s7 = inlined_call_operand.hbm [shape: bf16[32,128], index: 7, kind: input, shape index: {}]
  %s8 = inlined_call_operand.hbm [shape: f32[1,128], index: 8, kind: input, shape index: {}]
  %s9 = inlined_call_operand.hbm [shape: f32[2,2,128], index: 9, kind: output, shape index: {}]
  %s10 = sld [smem:[#allocation0]]
  $region82: #{relevant_token_attention.1} parent=0
    _
  %s12 = ssub.s32 1, %s10
  %s13 = scalar_select 0, %s12, %s10
  $region1: #{relevant_token_attention.1} parent=0
    #allocation2 [shape = 'u8[16384]{0}', space=vmem, size = 0x4000, scoped, tag = 'input window, operand 0, single buffered']
    #allocation3 [shape = 's32[1]{0}', space=sflag, size = 0x4, scoped, tag = 'scoped memory for relevant_token_attention.1']
    #allocation4 [shape = 's32[1]{0}', space=sflag, size = 0x4, scoped, tag = 'scoped memory for relevant_token_attention.1']
    #allocation5 [shape = 'u8[8192]{0}', space=vmem, size = 0x2000, scoped, tag = 'input window, operand 1, single buffered']
    #allocation6 [shape = 's32[1]{0}', space=sflag, size = 0x4, scoped, tag = 'scoped memory for relevant_token_attention.1']
    #allocation7 [shape = 'u8[512]{0}', space=vmem, size = 0x400, scoped, tag = 'input window, operand 2, single buffered']
    #allocation8 [shape = 'u8[512]{0}', space=vmem, size = 0x400, scoped, tag = 'input window, operand 3, single buffered']
    #allocation9 [shape = 's32[1]{0}', space=sflag, size = 0x4, scoped, tag = 'scoped memory for relevant_token_attention.1']
    #allocation10 [shape = 'u8[512]{0}', space=vmem, size = 0x400, scoped, tag = 'input window, operand 4, single buffered']
    #allocation11 [shape = 'u8[16384]{0}', space=vmem, size = 0x4000, scoped, tag = 'input window, operand 5, single buffered']
    #allocation12 [shape = 's32[1]{0}', space=sflag, size = 0x4, scoped, tag = 'scoped memory for relevant_token_attention.1']
    #allocation13 [shape = 'u8[1024]{0}', space=vmem, size = 0x400, scoped, tag = 'input window, operand 6, single buffered']
    #allocation14 [shape = 'u8[8192]{0}', space=vmem, size = 0x2000, scoped, tag = 'input window, operand 7, single buffered']
    #allocation15 [shape = 's32[1]{0}', space=sflag, size = 0x4, scoped, tag = 'scoped memory for relevant_token_attention.1']
    #allocation16 [shape = 'u8[512]{0}', space=vmem, size = 0x400, scoped, tag = 'input window, operand 8, single buffered']
    #allocation17 [shape = 'u8[2048]{0}', space=vmem, size = 0x800, scoped, tag = 'output window, operand 0, single buffered']
    %14 = vsyncpa [#allocation3], 0
    %15 = vsyncpa [#allocation6], 0
    %16 = vsyncpa [#allocation9], 0
    %17 = vsyncpa [#allocation12], 0
    %18 = vsyncpa [#allocation15], 0
    %19 = vsyncpa [#allocation4], 0
    // Predicated region
    $region2: #{relevant_token_attention.1} parent=1 // pred_check
      _
    $region3: #{relevant_token_attention.1} parent=1 // pred_check_branch
      %21 = sbr.rel (0) target = $region5
    $region4: #{relevant_token_attention.1} parent=1 // pred_region
      %s23 = ssub.s32 512, 512
      %24 = vsyncadd [#allocation3], %s23
      %s25 = sshll.u32 [#allocation2], 4
      %s26 = int_to_ptr.vmem [resolvable:$true] %s25
      %31 = dma.hbm_to_vmem [thread:$0]  %s0, 512, %s26, [#allocation3], 128, 128, 8
    $region5: #{relevant_token_attention.1} parent=1 // pred_fallthru
      _
    // Predicated region
    $region6: #{relevant_token_attention.1} parent=1 // pred_check
      _
    $region7: #{relevant_token_attention.1} parent=1 // pred_check_branch
      %33 = sbr.rel (0) target = $region9
    $region8: #{relevant_token_attention.1} parent=1 // pred_region
      %s35 = ssub.s32 256, 256
      %36 = vsyncadd [#allocation6], %s35
      %s37 = sshll.u32 [#allocation5], 4
      %s38 = int_to_ptr.vmem [resolvable:$true] %s37
      %43 = dma.hbm_to_vmem [thread:$0]  %s1, 256, %s38, [#allocation6], 128, 128, 8
    $region9: #{relevant_token_attention.1} parent=1 // pred_fallthru
      _
    // Predicated region
    $region10: #{relevant_token_attention.1} parent=1 // pred_check
      _
    $region11: #{relevant_token_attention.1} parent=1 // pred_check_branch
      %45 = sbr.rel (0) target = $region13
    $region12: #{relevant_token_attention.1} parent=1 // pred_region
      %s47 = ssub.s32 16, 16
      %48 = vsyncadd [#allocation6], %s47
      %s50 = sshll.u32 [#allocation7], 4
      %s51 = int_to_ptr.vmem [resolvable:$true] %s50
      %53 = dma.hbm_to_vmem [thread:$0]  %s2, 16, %s51, [#allocation6]
    $region13: #{relevant_token_attention.1} parent=1 // pred_fallthru
      _
    // Predicated region
    $region14: #{relevant_token_attention.1} parent=1 // pred_check
      _
    $region15: #{relevant_token_attention.1} parent=1 // pred_check_branch
      %55 = sbr.rel (0) target = $region17
    $region16: #{relevant_token_attention.1} parent=1 // pred_region
      %s57 = ssub.s32 16, 16
      %58 = vsyncadd [#allocation9], %s57
      %s60 = sshll.u32 [#allocation8], 4
      %s61 = int_to_ptr.vmem [resolvable:$true] %s60
      %63 = dma.hbm_to_vmem [thread:$0]  %s3, 16, %s61, [#allocation9]
    $region17: #{relevant_token_attention.1} parent=1 // pred_fallthru
      _
    // Predicated region
    $region18: #{relevant_token_attention.1} parent=1 // pred_check
      _
    $region19: #{relevant_token_attention.1} parent=1 // pred_check_branch
      %65 = sbr.rel (0) target = $region21
    $region20: #{relevant_token_attention.1} parent=1 // pred_region
      %s67 = ssub.s32 16, 16
      %68 = vsyncadd [#allocation9], %s67
      %s70 = sshll.u32 [#allocation10], 4
      %s71 = int_to_ptr.vmem [resolvable:$true] %s70
      %73 = dma.hbm_to_vmem [thread:$0]  %s4, 16, %s71, [#allocation9]
    $region21: #{relevant_token_attention.1} parent=1 // pred_fallthru
      _
    // Predicated region
    $region22: #{relevant_token_attention.1} parent=1 // pred_check
      _
    $region23: #{relevant_token_attention.1} parent=1 // pred_check_branch
      %75 = sbr.rel (0) target = $region25
    $region24: #{relevant_token_attention.1} parent=1 // pred_region
      %s77 = ssub.s32 512, 512
      %78 = vsyncadd [#allocation12], %s77
      %s79 = sshll.u32 [#allocation11], 4
      %s80 = int_to_ptr.vmem [resolvable:$true] %s79
      %85 = dma.hbm_to_vmem [thread:$0]  %s5, 512, %s80, [#allocation12], 128, 128, 8
    $region25: #{relevant_token_attention.1} parent=1 // pred_fallthru
      _
    // Predicated region
    $region26: #{relevant_token_attention.1} parent=1 // pred_check
      _
    $region27: #{relevant_token_attention.1} parent=1 // pred_check_branch
      %87 = sbr.rel (0) target = $region29
    $region28: #{relevant_token_attention.1} parent=1 // pred_region
      %s89 = ssub.s32 32, 32
      %90 = vsyncadd [#allocation12], %s89
      %s92 = sshll.u32 [#allocation13], 4
      %s93 = int_to_ptr.vmem [resolvable:$true] %s92
      %95 = dma.hbm_to_vmem [thread:$0]  %s6, 32, %s93, [#allocation12]
    $region29: #{relevant_token_attention.1} parent=1 // pred_fallthru
      _
    // Predicated region
    $region30: #{relevant_token_attention.1} parent=1 // pred_check
      _
    $region31: #{relevant_token_attention.1} parent=1 // pred_check_branch
      %97 = sbr.rel (0) target = $region33
    $region32: #{relevant_token_attention.1} parent=1 // pred_region
      %s99 = ssub.s32 256, 256
      %100 = vsyncadd [#allocation15], %s99
      %s101 = sshll.u32 [#allocation14], 4
      %s102 = int_to_ptr.vmem [resolvable:$true] %s101
      %107 = dma.hbm_to_vmem [thread:$0]  %s7, 256, %s102, [#allocation15], 64, 64, 4
    $region33: #{relevant_token_attention.1} parent=1 // pred_fallthru
      _
    // Predicated region
    $region34: #{relevant_token_attention.1} parent=1 // pred_check
      _
    $region35: #{relevant_token_attention.1} parent=1 // pred_check_branch
      %109 = sbr.rel (0) target = $region37
    $region36: #{relevant_token_attention.1} parent=1 // pred_region
      %s111 = ssub.s32 16, 16
      %112 = vsyncadd [#allocation15], %s111
      %s114 = sshll.u32 [#allocation16], 4
      %s115 = int_to_ptr.vmem [resolvable:$true] %s114
      %117 = dma.hbm_to_vmem [thread:$0]  %s8, 16, %s115, [#allocation15]
    $region37: #{relevant_token_attention.1} parent=1 // pred_fallthru
      _
    // Predicated region
    $region38: #{relevant_token_attention.1} parent=1 // pred_check
      _
    $region39: #{relevant_token_attention.1} parent=1 // pred_check_branch
      %119 = sbr.rel (0) target = $region41
    $region40: #{relevant_token_attention.1} parent=1 // pred_region
      %120 = dma.done [#allocation3], 512
    $region41: #{relevant_token_attention.1} parent=1 // pred_fallthru
      _
    // Predicated region
    $region42: #{relevant_token_attention.1} parent=1 // pred_check
      _
    $region43: #{relevant_token_attention.1} parent=1 // pred_check_branch
      %122 = sbr.rel (0) target = $region45
    $region44: #{relevant_token_attention.1} parent=1 // pred_region
      %123 = dma.done [#allocation6], 256
    $region45: #{relevant_token_attention.1} parent=1 // pred_fallthru
      _
    // Predicated region
    $region46: #{relevant_token_attention.1} parent=1 // pred_check
      _
    $region47: #{relevant_token_attention.1} parent=1 // pred_check_branch
      %125 = sbr.rel (0) target = $region49
    $region48: #{relevant_token_attention.1} parent=1 // pred_region
      %126 = dma.done [#allocation6], 16
    $region49: #{relevant_token_attention.1} parent=1 // pred_fallthru
      _
    // Predicated region
    $region50: #{relevant_token_attention.1} parent=1 // pred_check
      _
    $region51: #{relevant_token_attention.1} parent=1 // pred_check_branch
      %128 = sbr.rel (0) target = $region53
    $region52: #{relevant_token_attention.1} parent=1 // pred_region
      %129 = dma.done [#allocation9], 16
    $region53: #{relevant_token_attention.1} parent=1 // pred_fallthru
      _
    // Predicated region
    $region54: #{relevant_token_attention.1} parent=1 // pred_check
      _
    $region55: #{relevant_token_attention.1} parent=1 // pred_check_branch
      %131 = sbr.rel (0) target = $region57
    $region56: #{relevant_token_attention.1} parent=1 // pred_region
      %132 = dma.done [#allocation9], 16
    $region57: #{relevant_token_attention.1} parent=1 // pred_fallthru
      _
    // Predicated region
    $region58: #{relevant_token_attention.1} parent=1 // pred_check
      _
    $region59: #{relevant_token_attention.1} parent=1 // pred_check_branch
      %134 = sbr.rel (0) target = $region61
    $region60: #{relevant_token_attention.1} parent=1 // pred_region
      %135 = dma.done [#allocation12], 512
    $region61: #{relevant_token_attention.1} parent=1 // pred_fallthru
      _
    // Predicated region
    $region62: #{relevant_token_attention.1} parent=1 // pred_check
      _
    $region63: #{relevant_token_attention.1} parent=1 // pred_check_branch
      %137 = sbr.rel (0) target = $region65
    $region64: #{relevant_token_attention.1} parent=1 // pred_region
      %138 = dma.done [#allocation12], 32
    $region65: #{relevant_token_attention.1} parent=1 // pred_fallthru
      _
    // Predicated region
    $region66: #{relevant_token_attention.1} parent=1 // pred_check
      _
    $region67: #{relevant_token_attention.1} parent=1 // pred_check_branch
      %140 = sbr.rel (0) target = $region69
    $region68: #{relevant_token_attention.1} parent=1 // pred_region
      %141 = dma.done [#allocation15], 256
    $region69: #{relevant_token_attention.1} parent=1 // pred_fallthru
      _
    // Predicated region
    $region70: #{relevant_token_attention.1} parent=1 // pred_check
      _
    $region71: #{relevant_token_attention.1} parent=1 // pred_check_branch
      %143 = sbr.rel (0) target = $region73
    $region72: #{relevant_token_attention.1} parent=1 // pred_region
      %144 = dma.done [#allocation15], 16
    $region73: #{relevant_token_attention.1} parent=1 // pred_fallthru
      _
    %v146 = vld [vmem:[#allocation2] sm:$0xff]
    %v147 = vld [vmem:[#allocation2 + $0x8] sm:$0xff]
    %v148 = vld [vmem:[#allocation2 + $0x10] sm:$0xff]
    %v149 = vld [vmem:[#allocation2 + $0x18] sm:$0xff]
    %v150 = vld [vmem:[#allocation8] sm:$0x1]
    %v151 = vld [vmem:[#allocation10] sm:$0x1]
    %v152 = vld [vmem:[#allocation7] sm:$0x1]
    %v154 = vlaneseq
    %v155 = vshrl.u32 %v154, 7
    %v156 = vsub.s32 0, %v155
    %v157 = vrot.slane %v152, %v156
    %v159 = vmul.f32 %v146, %v157
    %v160 = vmul.f32 %v147, %v157
    %v161 = vmul.f32 %v148, %v157
    %v162 = vmul.f32 %v149, %v157
    %vm163 = vcmask 261120
    %v164 = vsel %vm163, %v159, 0.0
    %165 = vadd.xlane.f32.xlu0 %v164
    %v166 = vpop.xlane.xlu0 %165
    %v167 = vsel %vm163, %v160, 0.0
    %168 = vadd.xlane.f32.xlu0 %v167
    %v169 = vpop.xlane.xlu0 %168
    %v170 = vsel %vm163, %v161, 0.0
    %171 = vadd.xlane.f32.xlu0 %v170
    %v172 = vpop.xlane.xlu0 %171
    %v173 = vsel %vm163, %v162, 0.0
    %174 = vadd.xlane.f32.xlu0 %v173
    %v175 = vpop.xlane.xlu0 %174
    %v176 = vlaneseq
    %v177 = vand.u32 %v176, 127
    %v182 = vlaneseq
    %v183 = vshrl.u32 %v182, 7
    %v184 = vsub.s32 %v177, %v183
    %v185 = vrot.slane %v166, %v184
    %v186 = vadd.s32 %v177, 4294967288
    %v187 = vlaneseq
    %v188 = vshrl.u32 %v187, 7
    %v189 = vsub.s32 %v186, %v188
    %v190 = vrot.slane %v169, %v189
    %vm191 = vcmask 130112
    %v192 = vsel %vm191, %v190, %v185
    %v193 = vlaneseq
    %v194 = vshrl.u32 %v193, 7
    %v195 = vsub.s32 %v177, %v194
    %v196 = vrot.slane %v172, %v195
    %v197 = vlaneseq
    %v198 = vshrl.u32 %v197, 7
    %v199 = vsub.s32 %v186, %v198
    %v200 = vrot.slane %v175, %v199
    %v201 = vsel %vm191, %v200, %v196
    %vm202 = vcmask 1041409
    %v203 = vsel %vm202, %v201, %v192
    %vm205 = vcmask 123904
    %v206 = vsel %vm205, %v203, -inf
    %207 = vmax.xlane.f32.xlu0 %v206
    %v208 = vpop.xlane.xlu0 %207
    %v210 = vlaneseq
    %v211 = vshrl.u32 %v210, 7
    %v212 = vsub.s32 0, %v211
    %v213 = vrot.slane %v208, %v212
    %v214 = vlaneseq
    %v215 = vshrl.u32 %v214, 7
    %v216 = vsub.s32 1, %v215
    %v217 = vrot.slane %v208, %v216
    %vm220 = vcmp.eq.f32.partialorder %v166, %v213
    %vm221 = vcmp.eq.f32.partialorder %v169, %v213
    %vm222 = vcmp.eq.f32.partialorder %v172, %v217
    %vm223 = vcmp.eq.f32.partialorder %v175, %v217
    %225 = vbcast.lane.b32.xlu0 %v177, 256
    %v226 = vpop.permute.xlu0 %225
    %s228 = sor.u32 256, 8
    %229 = vbcast.lane.b32.xlu0 %v177, %s228
    %v230 = vpop.permute.xlu0 %229
    %v231 = vsel %vm220, %v226, 16
    %v232 = vsel %vm221, %v230, 16
    %v233 = vsel %vm222, %v226, 16
    %v234 = vsel %vm223, %v230, 16
    %235 = vset.pattern.permute.xlu0 0
    %236 = vperm.xlu0 %235, %v231
    %v237 = vpop.permute.xlu0 %236
    %238 = vset.pattern.permute.xlu0 0
    %239 = vperm.xlu0 %238, %v232
    %v240 = vpop.permute.xlu0 %239
    %241 = vset.pattern.permute.xlu0 0
    %242 = vperm.xlu0 %241, %v233
    %v243 = vpop.permute.xlu0 %242
    %244 = vset.pattern.permute.xlu0 0
    %245 = vperm.xlu0 %244, %v234
    %v246 = vpop.permute.xlu0 %245
    %v247 = vlaneseq
    %v248 = vshrl.u32 %v247, 7
    %v249 = vsub.s32 %v177, %v248
    %v250 = vrot.slane %v237, %v249
    %v251 = vlaneseq
    %v252 = vshrl.u32 %v251, 7
    %v253 = vsub.s32 %v186, %v252
    %v254 = vrot.slane %v240, %v253
    %v255 = vsel %vm191, %v254, %v250
    %v256 = vlaneseq
    %v257 = vshrl.u32 %v256, 7
    %v258 = vsub.s32 %v177, %v257
    %v259 = vrot.slane %v243, %v258
    %v260 = vlaneseq
    %v261 = vshrl.u32 %v260, 7
    %v262 = vsub.s32 %v186, %v261
    %v263 = vrot.slane %v246, %v262
    %v264 = vsel %vm191, %v263, %v259
    %v265 = vsel %vm202, %v264, %v255
    %v266 = vsel %vm205, %v265, 2147483647
    %v267 = vand.u32 %v266, 65535
    %v268 = vshra.s32 %v266, 16
    %v269 = vcvt.s32.f32 %v267
    %v270 = vcvt.s32.f32 %v268
    %271 = vmin.xlane.f32.xlu0 %v270
    %v272 = vpop.xlane.xlu0 %271
    %vm273 = vcmp.eq.f32.partialorder %v270, %v272
    %v274 = vsel %vm273, %v269, inf
    %275 = vmin.xlane.f32.xlu0 %v274
    %v276 = vpop.xlane.xlu0 %275
    %v277 = vcvt.f32.s32 %v276
    %v278 = vcvt.f32.s32 %v272
    %v279 = vshll.u32 %v278, 16
    %v280 = vadd.s32 %v279, %v277
    %vm281 = vcmp.eq.s32.totalorder %v177, %v280
    %v282 = vsel %vm281, 1, 0
    %v283 = vcvt.s32.f32 %v282
    %v286 = vunpack.c.l.s4 1966171168
    %v287 = vunpack.c.0.s8 %v286
    %v288 = vlaneseq
    %v289 = vshrl.u32 %v288, 7
    %v290 = vsub.s32 %v287, %v289
    %v291 = vrot.slane %v283, %v290
    %v292 = vcombine.high %v291, %v291
    %v294 = vunpack.c.l.s4 1966171168
    %v295 = vunpack.c.0.s8 %v294
    %v296 = vlaneseq
    %v297 = vshrl.u32 %v296, 7
    %v298 = vsub.s32 %v295, %v297
    %v299 = vrot.slane %v291, %v298
    %v301 = vunpack.c.l.s4 1966171168
    %v302 = vunpack.c.0.s8 %v301
    %v303 = vlaneseq
    %v304 = vshrl.u32 %v303, 7
    %v305 = vsub.s32 %v302, %v304
    %v306 = vrot.slane %v292, %v305
    %vm307 = vcmask 130048
    %v308 = vsel %vm307, %v299, 0
    %310 = vmatprep.subr.mxu0 0.0
    %311 = vmatpush1.msra.mxu0 %v146
    %312 = vmatprep.subr.mxu0 0.0
    %313 = vmatpush1.msra.mxu0 %v147
    %314 = vmatprep.subr.mxu0 0.0
    %315 = vmatpush1.msra.mxu0 0.0
    %316 = vmatprep.subr.mxu0 0.0
    %317 = vmatpush1.msra.mxu0 0.0
    %318 = vmatprep.subr.mxu0 0.0
    %319 = vmatpush1.msra.mxu0 0.0
    %320 = vmatprep.subr.mxu0 0.0
    %321 = vmatpush1.msra.mxu0 0.0
    %322 = vmatprep.subr.mxu0 0.0
    %323 = vmatpush1.msra.mxu0 0.0
    %324 = vmatprep.subr.mxu0 0.0
    %325 = vmatpush1.msra.mxu0 0.0
    %326 = vmatprep.subr.mxu0 0.0
    %327 = vmatpush1.msra.mxu0 0.0
    %328 = vmatprep.subr.mxu0 0.0
    %329 = vmatpush1.msra.mxu0 0.0
    %330 = vmatprep.subr.mxu0 0.0
    %331 = vmatpush1.msra.mxu0 0.0
    %332 = vmatprep.subr.mxu0 0.0
    %333 = vmatpush1.msra.mxu0 0.0
    %334 = vmatprep.subr.mxu0 0.0
    %335 = vmatpush1.msra.mxu0 0.0
    %336 = vmatprep.subr.mxu0 0.0
    %337 = vmatpush1.msra.mxu0 0.0
    %338 = vmatprep.subr.mxu0 0.0
    %339 = vmatpush1.msra.mxu0 0.0
    %340 = vmatprep.subr.mxu0 0.0
    %341 = vmatpush1.msra.mxu0 0.0
    %342 = vmatprep.subr.mxu0 0.0
    %343 = vmatpush1.msra.mxu0 0.0
    %344 = vmatprep.subr.mxu0 0.0
    %345 = vmatpush1.msra.mxu0 0.0
    %346 = vmatprep.subr.mxu0 0.0
    %347 = vmatpush1.msra.mxu0 0.0
    %348 = vmatprep.subr.mxu0 0.0
    %349 = vmatpush1.msra.mxu0 0.0
    %350 = vmatprep.subr.mxu0 0.0
    %351 = vmatpush1.msra.mxu0 0.0
    %352 = vmatprep.subr.mxu0 0.0
    %353 = vmatpush1.msra.mxu0 0.0
    %354 = vmatprep.subr.mxu0 0.0
    %355 = vmatpush1.msra.mxu0 0.0
    %356 = vmatprep.subr.mxu0 0.0
    %357 = vmatpush1.msra.mxu0 0.0
    %358 = vmatprep.subr.mxu0 0.0
    %359 = vmatpush1.msra.mxu0 0.0
    %360 = vmatprep.subr.mxu0 0.0
    %361 = vmatpush1.msra.mxu0 0.0
    %362 = vmatprep.subr.mxu0 0.0
    %363 = vmatpush1.msra.mxu0 0.0
    %364 = vmatprep.subr.mxu0 0.0
    %365 = vmatpush1.msra.mxu0 0.0
    %366 = vmatprep.subr.mxu0 0.0
    %367 = vmatpush1.msra.mxu0 0.0
    %368 = vmatprep.subr.mxu0 0.0
    %369 = vmatpush1.msra.mxu0 0.0
    %370 = vmatprep.subr.mxu0 0.0
    %371 = vmatpush1.msra.mxu0 0.0
    %372 = vmatprep.subr.mxu0 0.0
    %373 = vmatpush1.msra.mxu0 0.0
    %374 = vmatprep.mubr.f32.mxu0 0.0
    %375 = vmatmul.mubr.f32.gmra.mrb[0].mxu0 %v308
    %v376 = vpop.f32.mrb[0].mxu0
    %v377 = vadd.f32 0.0, %v376
    %v378 = vpop.f32.mrb[0].mxu0
    %379 = vdwg.mxu0
    %v380 = vsel %vm307, %v306, 0
    %382 = vmatprep.subr.mxu0 0.0
    %383 = vmatpush1.msra.mxu0 %v148
    %384 = vmatprep.subr.mxu0 0.0
    %385 = vmatpush1.msra.mxu0 %v149
    %386 = vmatprep.subr.mxu0 0.0
    %387 = vmatpush1.msra.mxu0 0.0
    %388 = vmatprep.subr.mxu0 0.0
    %389 = vmatpush1.msra.mxu0 0.0
    %390 = vmatprep.subr.mxu0 0.0
    %391 = vmatpush1.msra.mxu0 0.0
    %392 = vmatprep.subr.mxu0 0.0
    %393 = vmatpush1.msra.mxu0 0.0
    %394 = vmatprep.subr.mxu0 0.0
    %395 = vmatpush1.msra.mxu0 0.0
    %396 = vmatprep.subr.mxu0 0.0
    %397 = vmatpush1.msra.mxu0 0.0
    %398 = vmatprep.subr.mxu0 0.0
    %399 = vmatpush1.msra.mxu0 0.0
    %400 = vmatprep.subr.mxu0 0.0
    %401 = vmatpush1.msra.mxu0 0.0
    %402 = vmatprep.subr.mxu0 0.0
    %403 = vmatpush1.msra.mxu0 0.0
    %404 = vmatprep.subr.mxu0 0.0
    %405 = vmatpush1.msra.mxu0 0.0
    %406 = vmatprep.subr.mxu0 0.0
    %407 = vmatpush1.msra.mxu0 0.0
    %408 = vmatprep.subr.mxu0 0.0
    %409 = vmatpush1.msra.mxu0 0.0
    %410 = vmatprep.subr.mxu0 0.0
    %411 = vmatpush1.msra.mxu0 0.0
    %412 = vmatprep.subr.mxu0 0.0
    %413 = vmatpush1.msra.mxu0 0.0
    %414 = vmatprep.subr.mxu0 0.0
    %415 = vmatpush1.msra.mxu0 0.0
    %416 = vmatprep.subr.mxu0 0.0
    %417 = vmatpush1.msra.mxu0 0.0
    %418 = vmatprep.subr.mxu0 0.0
    %419 = vmatpush1.msra.mxu0 0.0
    %420 = vmatprep.subr.mxu0 0.0
    %421 = vmatpush1.msra.mxu0 0.0
    %422 = vmatprep.subr.mxu0 0.0
    %423 = vmatpush1.msra.mxu0 0.0
    %424 = vmatprep.subr.mxu0 0.0
    %425 = vmatpush1.msra.mxu0 0.0
    %426 = vmatprep.subr.mxu0 0.0
    %427 = vmatpush1.msra.mxu0 0.0
    %428 = vmatprep.subr.mxu0 0.0
    %429 = vmatpush1.msra.mxu0 0.0
    %430 = vmatprep.subr.mxu0 0.0
    %431 = vmatpush1.msra.mxu0 0.0
    %432 = vmatprep.subr.mxu0 0.0
    %433 = vmatpush1.msra.mxu0 0.0
    %434 = vmatprep.subr.mxu0 0.0
    %435 = vmatpush1.msra.mxu0 0.0
    %436 = vmatprep.subr.mxu0 0.0
    %437 = vmatpush1.msra.mxu0 0.0
    %438 = vmatprep.subr.mxu0 0.0
    %439 = vmatpush1.msra.mxu0 0.0
    %440 = vmatprep.subr.mxu0 0.0
    %441 = vmatpush1.msra.mxu0 0.0
    %442 = vmatprep.subr.mxu0 0.0
    %443 = vmatpush1.msra.mxu0 0.0
    %444 = vmatprep.subr.mxu0 0.0
    %445 = vmatpush1.msra.mxu0 0.0
    %446 = vmatprep.mubr.f32.mxu0 0.0
    %447 = vmatmul.mubr.f32.gmra.mrb[0].mxu0 %v380
    %v448 = vpop.f32.mrb[0].mxu0
    %v449 = vadd.f32 0.0, %v448
    %v450 = vpop.f32.mrb[0].mxu0
    %451 = vdwg.mxu0
    %v452 = vld [vmem:[#allocation5] sm:$0xff]
    %v453 = vld [vmem:[#allocation5 + $0x8] sm:$0xff]
    %v454 = vsel %vm307, %v283, 0
    %456 = vmatprep.subr.mxu0 0.0
    %457 = vmatpush1.msra.mxu0 %v452
    %458 = vmatprep.subr.mxu0 0.0
    %459 = vmatpush1.msra.mxu0 %v453
    %460 = vmatprep.subr.mxu0 0.0
    %461 = vmatpush1.msra.mxu0 0.0
    %462 = vmatprep.subr.mxu0 0.0
    %463 = vmatpush1.msra.mxu0 0.0
    %464 = vmatprep.subr.mxu0 0.0
    %465 = vmatpush1.msra.mxu0 0.0
    %466 = vmatprep.subr.mxu0 0.0
    %467 = vmatpush1.msra.mxu0 0.0
    %468 = vmatprep.subr.mxu0 0.0
    %469 = vmatpush1.msra.mxu0 0.0
    %470 = vmatprep.subr.mxu0 0.0
    %471 = vmatpush1.msra.mxu0 0.0
    %472 = vmatprep.subr.mxu0 0.0
    %473 = vmatpush1.msra.mxu0 0.0
    %474 = vmatprep.subr.mxu0 0.0
    %475 = vmatpush1.msra.mxu0 0.0
    %476 = vmatprep.subr.mxu0 0.0
    %477 = vmatpush1.msra.mxu0 0.0
    %478 = vmatprep.subr.mxu0 0.0
    %479 = vmatpush1.msra.mxu0 0.0
    %480 = vmatprep.subr.mxu0 0.0
    %481 = vmatpush1.msra.mxu0 0.0
    %482 = vmatprep.subr.mxu0 0.0
    %483 = vmatpush1.msra.mxu0 0.0
    %484 = vmatprep.subr.mxu0 0.0
    %485 = vmatpush1.msra.mxu0 0.0
    %486 = vmatprep.subr.mxu0 0.0
    %487 = vmatpush1.msra.mxu0 0.0
    %488 = vmatprep.subr.mxu0 0.0
    %489 = vmatpush1.msra.mxu0 0.0
    %490 = vmatprep.subr.mxu0 0.0
    %491 = vmatpush1.msra.mxu0 0.0
    %492 = vmatprep.subr.mxu0 0.0
    %493 = vmatpush1.msra.mxu0 0.0
    %494 = vmatprep.subr.mxu0 0.0
    %495 = vmatpush1.msra.mxu0 0.0
    %496 = vmatprep.subr.mxu0 0.0
    %497 = vmatpush1.msra.mxu0 0.0
    %498 = vmatprep.subr.mxu0 0.0
    %499 = vmatpush1.msra.mxu0 0.0
    %500 = vmatprep.subr.mxu0 0.0
    %501 = vmatpush1.msra.mxu0 0.0
    %502 = vmatprep.subr.mxu0 0.0
    %503 = vmatpush1.msra.mxu0 0.0
    %504 = vmatprep.subr.mxu0 0.0
    %505 = vmatpush1.msra.mxu0 0.0
    %506 = vmatprep.subr.mxu0 0.0
    %507 = vmatpush1.msra.mxu0 0.0
    %508 = vmatprep.subr.mxu0 0.0
    %509 = vmatpush1.msra.mxu0 0.0
    %510 = vmatprep.subr.mxu0 0.0
    %511 = vmatpush1.msra.mxu0 0.0
    %512 = vmatprep.subr.mxu0 0.0
    %513 = vmatpush1.msra.mxu0 0.0
    %514 = vmatprep.subr.mxu0 0.0
    %515 = vmatpush1.msra.mxu0 0.0
    %516 = vmatprep.subr.mxu0 0.0
    %517 = vmatpush1.msra.mxu0 0.0
    %518 = vmatprep.subr.mxu0 0.0
    %519 = vmatpush1.msra.mxu0 0.0
    %520 = vmatprep.mubr.f32.mxu0 0.0
    %521 = vmatmul.mubr.f32.gmra.mrb[0].mxu0 %v454
    %v522 = vpop.f32.mrb[0].mxu0
    %v523 = vadd.f32 0.0, %v522
    %v524 = vpop.f32.mrb[0].mxu0
    %525 = vdwg.mxu0
    %v526 = vsel %vm163, %v146, 0.0
    %527 = vadd.xlane.f32.xlu0 %v526
    %v528 = vpop.xlane.xlu0 %527
    %v529 = vsel %vm163, %v147, 0.0
    %530 = vadd.xlane.f32.xlu0 %v529
    %v531 = vpop.xlane.xlu0 %530
    %v532 = vsel %vm163, %v148, 0.0
    %533 = vadd.xlane.f32.xlu0 %v532
    %v534 = vpop.xlane.xlu0 %533
    %v535 = vsel %vm163, %v149, 0.0
    %536 = vadd.xlane.f32.xlu0 %v535
    %v537 = vpop.xlane.xlu0 %536
    %v538 = vrcp.pop 32.0
    %v539 = vmul.f32 %v528, %v538
    %v540 = vmul.f32 %v531, %v538
    %v541 = vmul.f32 %v534, %v538
    %v542 = vmul.f32 %v537, %v538
    %v543 = vsub.f32 %v146, %v539
    %v544 = vsub.f32 %v147, %v540
    %v545 = vsub.f32 %v148, %v541
    %v546 = vsub.f32 %v149, %v542
    %v547 = vmul.f32 %v543, %v543
    %v548 = vmul.f32 %v544, %v544
    %v549 = vmul.f32 %v545, %v545
    %v550 = vmul.f32 %v546, %v546
    %v551 = vsel %vm163, %v547, 0.0
    %552 = vadd.xlane.f32.xlu0 %v551
    %v553 = vpop.xlane.xlu0 %552
    %v554 = vsel %vm163, %v548, 0.0
    %555 = vadd.xlane.f32.xlu0 %v554
    %v556 = vpop.xlane.xlu0 %555
    %v557 = vsel %vm163, %v549, 0.0
    %558 = vadd.xlane.f32.xlu0 %v557
    %v559 = vpop.xlane.xlu0 %558
    %v560 = vsel %vm163, %v550, 0.0
    %561 = vadd.xlane.f32.xlu0 %v560
    %v562 = vpop.xlane.xlu0 %561
    %v563 = vmul.f32 %v553, %v538
    %v564 = vmul.f32 %v556, %v538
    %v565 = vmul.f32 %v559, %v538
    %v566 = vmul.f32 %v562, %v538
    %v567 = vadd.f32 %v563, 1e-05
    %v568 = vadd.f32 %v564, 1e-05
    %v569 = vadd.f32 %v565, 1e-05
    %v570 = vadd.f32 %v566, 1e-05
    %v571 = vrsqrt.pop %v567
    %v572 = vrsqrt.pop %v568
    %v573 = vrsqrt.pop %v569
    %v574 = vrsqrt.pop %v570
    %v575 = vmul.f32 %v543, %v571
    %v576 = vmul.f32 %v544, %v572
    %v577 = vmul.f32 %v545, %v573
    %v578 = vmul.f32 %v546, %v574
    %v580 = vlaneseq
    %v581 = vshrl.u32 %v580, 7
    %v582 = vsub.s32 0, %v581
    %v583 = vrot.slane %v150, %v582
    %v585 = vmul.f32 %v575, %v583
    %v586 = vmul.f32 %v576, %v583
    %v587 = vmul.f32 %v577, %v583
    %v588 = vmul.f32 %v578, %v583
    %v590 = vlaneseq
    %v591 = vshrl.u32 %v590, 7
    %v592 = vsub.s32 0, %v591
    %v593 = vrot.slane %v151, %v592
    %v595 = vadd.f32 %v585, %v593
    %v596 = vadd.f32 %v586, %v593
    %v597 = vadd.f32 %v587, %v593
    %v598 = vadd.f32 %v588, %v593
    %v599 = vpack.c.bf16 %v596, %v595
    %v600 = vpack.c.bf16 %v598, %v597
    %v601 = vld [vmem:[#allocation11] sm:$0xff]
    %v602 = vld [vmem:[#allocation11 + $0x8] sm:$0xff]
    %v603 = vld [vmem:[#allocation11 + $0x10] sm:$0xff]
    %v604 = vld [vmem:[#allocation11 + $0x18] sm:$0xff]
    %v605 = vld [vmem:[#allocation13] sm:$0x3]
    %v607 = vlaneseq
    %v608 = vshrl.u32 %v607, 7
    %v609 = vsub.s32 0, %v608
    %v610 = vrot.slane %v605, %v609
    %v611 = vlaneseq
    %v612 = vshrl.u32 %v611, 7
    %v613 = vsub.s32 1, %v612
    %v614 = vrot.slane %v605, %v613
    %v621 = vunpack.c.l.b16 %v601
    %v622 = vunpack.c.h.b16 %v601
    %v623 = vunpack.c.l.b16 %v602
    %v624 = vunpack.c.h.b16 %v602
    %v625 = vunpack.c.l.b16 %v603
    %v626 = vunpack.c.h.b16 %v603
    %v627 = vunpack.c.l.b16 %v604
    %v628 = vunpack.c.h.b16 %v604
    %v629 = vpack.c.b16 %v623, %v621
    %v630 = vpack.c.b16 %v624, %v622
    %v631 = vpack.c.b16 %v627, %v625
    %v632 = vpack.c.b16 %v628, %v626
    %v638 = vsel %vm163, %v599, 0
    %v641 = vsel %vm163, %v600, 0
    %643 = vmatprep.subr.bf16.mxu0 %v630
    %644 = vmatpush1.bf16.msra.mxu0 %v629
    %645 = vmatprep.subr.bf16.mxu0 %v632
    %646 = vmatpush1.bf16.msra.mxu0 %v631
    %647 = vmatprep.subr.bf16.mxu0 0
    %648 = vmatpush1.bf16.msra.mxu0 0
    %649 = vmatprep.subr.bf16.mxu0 0
    %650 = vmatpush1.bf16.msra.mxu0 0
    %651 = vmatprep.subr.bf16.mxu0 0
    %652 = vmatpush1.bf16.msra.mxu0 0
    %653 = vmatprep.subr.bf16.mxu0 0
    %654 = vmatpush1.bf16.msra.mxu0 0
    %655 = vmatprep.subr.bf16.mxu0 0
    %656 = vmatpush1.bf16.msra.mxu0 0
    %657 = vmatprep.subr.bf16.mxu0 0
    %658 = vmatpush1.bf16.msra.mxu0 0
    %659 = vmatprep.subr.bf16.mxu0 0
    %660 = vmatpush1.bf16.msra.mxu0 0
    %661 = vmatprep.subr.bf16.mxu0 0
    %662 = vmatpush1.bf16.msra.mxu0 0
    %663 = vmatprep.subr.bf16.mxu0 0
    %664 = vmatpush1.bf16.msra.mxu0 0
    %665 = vmatprep.subr.bf16.mxu0 0
    %666 = vmatpush1.bf16.msra.mxu0 0
    %667 = vmatprep.subr.bf16.mxu0 0
    %668 = vmatpush1.bf16.msra.mxu0 0
    %669 = vmatprep.subr.bf16.mxu0 0
    %670 = vmatpush1.bf16.msra.mxu0 0
    %671 = vmatprep.subr.bf16.mxu0 0
    %672 = vmatpush1.bf16.msra.mxu0 0
    %673 = vmatprep.subr.bf16.mxu0 0
    %674 = vmatpush1.bf16.msra.mxu0 0
    %675 = vmatprep.mubr.bf16.mxu0 0
    %676 = vmatmul.mubr.bf16.gmra.mrb[0].mxu0 %v638
    %v677 = vpop.f32.mrb[0].mxu0
    %v678 = vadd.f32 %v610, %v677
    %v679 = vpop.f32.mrb[0].mxu0
    %v680 = vadd.f32 %v614, %v679
    %v681 = vpop.f32.mrb[0].mxu0
    %v682 = vadd.f32 %v610, %v681
    %v683 = vpop.f32.mrb[0].mxu0
    %v684 = vadd.f32 %v614, %v683
    %685 = vmatprep.mubr.bf16.mxu0 0
    %686 = vmatmul.mubr.bf16.gmra.mrb[0].mxu0 %v641
    %v687 = vpop.f32.mrb[0].mxu0
    %v688 = vadd.f32 %v610, %v687
    %v689 = vpop.f32.mrb[0].mxu0
    %v690 = vadd.f32 %v614, %v689
    %v691 = vpop.f32.mrb[0].mxu0
    %v692 = vadd.f32 %v610, %v691
    %v693 = vpop.f32.mrb[0].mxu0
    %v694 = vadd.f32 %v614, %v693
    %695 = vdwg.mxu0
    %v698 = vrot.slane %v449, 7
    %v699 = vsel %vm202, %v698, %v377
    %vm701 = vcmask 254976
    %v702 = vsel %vm701, %v699, 0.0
    %703 = vadd.xlane.f32.xlu0 %v702
    %v704 = vpop.xlane.xlu0 %703
    %v705 = vmul.f32 %v704, %v538
    %v707 = vrot.slane %v705, 1
    %v710 = vsub.f32 %v377, %v705
    %v711 = vsub.f32 %v449, %v707
    %v712 = vmul.f32 %v710, %v710
    %v713 = vmul.f32 %v711, %v711
    %v716 = vrot.slane %v713, 7
    %v717 = vsel %vm202, %v716, %v712
    %v719 = vsel %vm701, %v717, 0.0
    %720 = vadd.xlane.f32.xlu0 %v719
    %v721 = vpop.xlane.xlu0 %720
    %v722 = vmul.f32 %v721, %v538
    %v723 = vadd.f32 %v722, 1e-05
    %v724 = vrsqrt.pop %v723
    %v726 = vrot.slane %v724, 1
    %v729 = vmul.f32 %v710, %v724
    %v730 = vmul.f32 %v711, %v726
    %v731 = vmul.f32 %v729, %v583
    %v732 = vmul.f32 %v730, %v583
    %v733 = vadd.f32 %v731, %v593
    %v734 = vadd.f32 %v732, %v593
    %v735 = vpack.c.bf16 %v733, %v733
    %v736 = vpack.c.bf16 %v734, %v734
    %v737 = vld [vmem:[#allocation11] sm:$0xf]
    %v738 = vld [vmem:[#allocation11 + $0x8] sm:$0xf]
    %v739 = vld [vmem:[#allocation11 + $0x10] sm:$0xf]
    %v740 = vld [vmem:[#allocation11 + $0x18] sm:$0xf]
    %v741 = vld [vmem:[#allocation13] sm:$0x1]
    %v743 = vlaneseq
    %v744 = vshrl.u32 %v743, 7
    %v745 = vsub.s32 0, %v744
    %v746 = vrot.slane %v741, %v745
    %v750 = vunpack.c.l.b16 %v735
    %v751 = vunpack.c.l.b16 %v736
    %v752 = vrot.slane %v751, 7
    %v753 = vsel %vm202, %v752, %v750
    %v754 = vpack.c.b16 %v753, %v753
    %v759 = vunpack.c.l.b16 %v737
    %v760 = vunpack.c.l.b16 %v738
    %v761 = vunpack.c.l.b16 %v739
    %v762 = vunpack.c.l.b16 %v740
    %v763 = vpack.c.b16 %v760, %v759
    %v764 = vpack.c.b16 %v762, %v761
    %v768 = vsel %vm163, %v754, 0
    %770 = vmatprep.subr.bf16.mxu0 0
    %771 = vmatpush1.bf16.msra.mxu0 %v763
    %772 = vmatprep.subr.bf16.mxu0 0
    %773 = vmatpush1.bf16.msra.mxu0 %v764
    %774 = vmatprep.subr.bf16.mxu0 0
    %775 = vmatpush1.bf16.msra.mxu0 0
    %776 = vmatprep.subr.bf16.mxu0 0
    %777 = vmatpush1.bf16.msra.mxu0 0
    %778 = vmatprep.subr.bf16.mxu0 0
    %779 = vmatpush1.bf16.msra.mxu0 0
    %780 = vmatprep.subr.bf16.mxu0 0
    %781 = vmatpush1.bf16.msra.mxu0 0
    %782 = vmatprep.subr.bf16.mxu0 0
    %783 = vmatpush1.bf16.msra.mxu0 0
    %784 = vmatprep.subr.bf16.mxu0 0
    %785 = vmatpush1.bf16.msra.mxu0 0
    %786 = vmatprep.subr.bf16.mxu0 0
    %787 = vmatpush1.bf16.msra.mxu0 0
    %788 = vmatprep.subr.bf16.mxu0 0
    %789 = vmatpush1.bf16.msra.mxu0 0
    %790 = vmatprep.subr.bf16.mxu0 0
    %791 = vmatpush1.bf16.msra.mxu0 0
    %792 = vmatprep.subr.bf16.mxu0 0
    %793 = vmatpush1.bf16.msra.mxu0 0
    %794 = vmatprep.subr.bf16.mxu0 0
    %795 = vmatpush1.bf16.msra.mxu0 0
    %796 = vmatprep.subr.bf16.mxu0 0
    %797 = vmatpush1.bf16.msra.mxu0 0
    %798 = vmatprep.subr.bf16.mxu0 0
    %799 = vmatpush1.bf16.msra.mxu0 0
    %800 = vmatprep.subr.bf16.mxu0 0
    %801 = vmatpush1.bf16.msra.mxu0 0
    %802 = vmatprep.mubr.bf16.mxu0 0
    %803 = vmatmul.mubr.bf16.gmra.mrb[0].mxu0 %v768
    %v804 = vpop.f32.mrb[0].mxu0
    %v805 = vadd.f32 %v746, %v804
    %v806 = vpop.f32.mrb[0].mxu0
    %v807 = vpop.f32.mrb[0].mxu0
    %v808 = vpop.f32.mrb[0].mxu0
    %809 = vdwg.mxu0
    %v810 = vmul.f32 %v805, 0.25
    %v811 = vpack.c.bf16 %v810, %v810
    %v812 = vpack.c.bf16 %v377, %v377
    %v813 = vpack.c.bf16 %v449, %v449
    %v814 = vld [vmem:[#allocation14] sm:$0xf]
    %v815 = vld [vmem:[#allocation14 + $0x4] sm:$0xf]
    %v816 = vld [vmem:[#allocation14 + $0x8] sm:$0xf]
    %v817 = vld [vmem:[#allocation14 + $0xc] sm:$0xf]
    %v818 = vld [vmem:[#allocation16] sm:$0x1]
    %v820 = vlaneseq
    %v821 = vshrl.u32 %v820, 7
    %v822 = vsub.s32 0, %v821
    %v823 = vrot.slane %v818, %v822
    %v827 = vunpack.c.l.b16 %v812
    %v828 = vunpack.c.l.b16 %v813
    %v829 = vrot.slane %v828, 7
    %v830 = vsel %vm202, %v829, %v827
    %v831 = vpack.c.b16 %v830, %v830
    %v836 = vunpack.c.l.b16 %v814
    %v837 = vunpack.c.l.b16 %v815
    %v838 = vunpack.c.l.b16 %v816
    %v839 = vunpack.c.l.b16 %v817
    %v840 = vpack.c.b16 %v837, %v836
    %v841 = vpack.c.b16 %v839, %v838
    %v845 = vsel %vm163, %v831, 0
    %847 = vmatprep.subr.bf16.mxu0 0
    %848 = vmatpush1.bf16.msra.mxu0 %v840
    %849 = vmatprep.subr.bf16.mxu0 0
    %850 = vmatpush1.bf16.msra.mxu0 %v841
    %851 = vmatprep.subr.bf16.mxu0 0
    %852 = vmatpush1.bf16.msra.mxu0 0
    %853 = vmatprep.subr.bf16.mxu0 0
    %854 = vmatpush1.bf16.msra.mxu0 0
    %855 = vmatprep.subr.bf16.mxu0 0
    %856 = vmatpush1.bf16.msra.mxu0 0
    %857 = vmatprep.subr.bf16.mxu0 0
    %858 = vmatpush1.bf16.msra.mxu0 0
    %859 = vmatprep.subr.bf16.mxu0 0
    %860 = vmatpush1.bf16.msra.mxu0 0
    %861 = vmatprep.subr.bf16.mxu0 0
    %862 = vmatpush1.bf16.msra.mxu0 0
    %863 = vmatprep.subr.bf16.mxu0 0
    %864 = vmatpush1.bf16.msra.mxu0 0
    %865 = vmatprep.subr.bf16.mxu0 0
    %866 = vmatpush1.bf16.msra.mxu0 0
    %867 = vmatprep.subr.bf16.mxu0 0
    %868 = vmatpush1.bf16.msra.mxu0 0
    %869 = vmatprep.subr.bf16.mxu0 0
    %870 = vmatpush1.bf16.msra.mxu0 0
    %871 = vmatprep.subr.bf16.mxu0 0
    %872 = vmatpush1.bf16.msra.mxu0 0
    %873 = vmatprep.subr.bf16.mxu0 0
    %874 = vmatpush1.bf16.msra.mxu0 0
    %875 = vmatprep.subr.bf16.mxu0 0
    %876 = vmatpush1.bf16.msra.mxu0 0
    %877 = vmatprep.subr.bf16.mxu0 0
    %878 = vmatpush1.bf16.msra.mxu0 0
    %879 = vmatprep.mubr.bf16.mxu0 0
    %880 = vmatmul.mubr.bf16.gmra.mrb[0].mxu0 %v845
    %v881 = vpop.f32.mrb[0].mxu0
    %v882 = vadd.f32 %v823, %v881
    %v883 = vpop.f32.mrb[0].mxu0
    %v884 = vpop.f32.mrb[0].mxu0
    %v885 = vpop.f32.mrb[0].mxu0
    %886 = vdwg.mxu0
    %v887 = vpack.c.bf16 %v682, %v678
    %v888 = vpack.c.bf16 %v692, %v688
    %889 = vmatprep.subr.bf16.mxu0 0
    %890 = vmatpush1.bf16.xpose.msra.mxu0 %v887
    %891 = vmatprep.subr.bf16.mxu0 0
    %892 = vmatpush1.bf16.xpose.msra.mxu0 0
    %893 = vmatprep.subr.bf16.mxu0 0
    %894 = vmatpush1.bf16.xpose.msra.mxu0 0
    %895 = vmatprep.subr.bf16.mxu0 0
    %896 = vmatpush1.bf16.xpose.msra.mxu0 0
    %897 = vmatprep.subr.bf16.mxu0 0
    %898 = vmatpush1.bf16.xpose.msra.mxu0 0
    %899 = vmatprep.subr.bf16.mxu0 0
    %900 = vmatpush1.bf16.xpose.msra.mxu0 0
    %901 = vmatprep.subr.bf16.mxu0 0
    %902 = vmatpush1.bf16.xpose.msra.mxu0 0
    %903 = vmatprep.subr.bf16.mxu0 0
    %904 = vmatpush1.bf16.xpose.msra.mxu0 0
    %905 = vmatprep.subr.bf16.mxu0 0
    %906 = vmatpush1.bf16.xpose.msra.mxu0 0
    %907 = vmatprep.subr.bf16.mxu0 0
    %908 = vmatpush1.bf16.xpose.msra.mxu0 0
    %909 = vmatprep.subr.bf16.mxu0 0
    %910 = vmatpush1.bf16.xpose.msra.mxu0 0
    %911 = vmatprep.subr.bf16.mxu0 0
    %912 = vmatpush1.bf16.xpose.msra.mxu0 0
    %913 = vmatprep.subr.bf16.mxu0 0
    %914 = vmatpush1.bf16.xpose.msra.mxu0 0
    %915 = vmatprep.subr.bf16.mxu0 0
    %916 = vmatpush1.bf16.xpose.msra.mxu0 0
    %917 = vmatprep.subr.bf16.mxu0 0
    %918 = vmatpush1.bf16.xpose.msra.mxu0 0
    %919 = vmatprep.subr.bf16.mxu0 0
    %920 = vmatpush1.bf16.xpose.msra.mxu0 0
    %921 = vmatprep.mubr.bf16.mxu0 0
    %922 = vmatmul.mubr.bf16.gmra.mrb[0].mxu0 %v811
    %v923 = vpop.f32.mrb[0].mxu0
    %v924 = vadd.f32 %v523, %v923
    %v925 = vpop.f32.mrb[0].mxu0
    %v926 = vpop.f32.mrb[0].mxu0
    %v927 = vpop.f32.mrb[0].mxu0
    %928 = vdwg.mxu0
    %929 = vmatprep.subr.bf16.mxu0 0
    %930 = vmatpush1.bf16.xpose.msra.mxu0 %v888
    %931 = vmatprep.subr.bf16.mxu0 0
    %932 = vmatpush1.bf16.xpose.msra.mxu0 0
    %933 = vmatprep.subr.bf16.mxu0 0
    %934 = vmatpush1.bf16.xpose.msra.mxu0 0
    %935 = vmatprep.subr.bf16.mxu0 0
    %936 = vmatpush1.bf16.xpose.msra.mxu0 0
    %937 = vmatprep.subr.bf16.mxu0 0
    %938 = vmatpush1.bf16.xpose.msra.mxu0 0
    %939 = vmatprep.subr.bf16.mxu0 0
    %940 = vmatpush1.bf16.xpose.msra.mxu0 0
    %941 = vmatprep.subr.bf16.mxu0 0
    %942 = vmatpush1.bf16.xpose.msra.mxu0 0
    %943 = vmatprep.subr.bf16.mxu0 0
    %944 = vmatpush1.bf16.xpose.msra.mxu0 0
    %945 = vmatprep.subr.bf16.mxu0 0
    %946 = vmatpush1.bf16.xpose.msra.mxu0 0
    %947 = vmatprep.subr.bf16.mxu0 0
    %948 = vmatpush1.bf16.xpose.msra.mxu0 0
    %949 = vmatprep.subr.bf16.mxu0 0
    %950 = vmatpush1.bf16.xpose.msra.mxu0 0
    %951 = vmatprep.subr.bf16.mxu0 0
    %952 = vmatpush1.bf16.xpose.msra.mxu0 0
    %953 = vmatprep.subr.bf16.mxu0 0
    %954 = vmatpush1.bf16.xpose.msra.mxu0 0
    %955 = vmatprep.subr.bf16.mxu0 0
    %956 = vmatpush1.bf16.xpose.msra.mxu0 0
    %957 = vmatprep.subr.bf16.mxu0 0
    %958 = vmatpush1.bf16.xpose.msra.mxu0 0
    %959 = vmatprep.subr.bf16.mxu0 0
    %960 = vmatpush1.bf16.xpose.msra.mxu0 0
    %961 = vmatprep.mubr.bf16.mxu0 0
    %962 = vmatmul.mubr.bf16.gmra.mrb[0].mxu0 %v811
    %v963 = vpop.f32.mrb[0].mxu0
    %v964 = vadd.f32 %v523, %v963
    %v965 = vpop.f32.mrb[0].mxu0
    %v966 = vpop.f32.mrb[0].mxu0
    %v967 = vpop.f32.mrb[0].mxu0
    %968 = vdwg.mxu0
    %v969 = vsel %vm205, %v924, -inf
    %970 = vmax.xlane.f32.xlu0 %v969
    %v971 = vpop.xlane.xlu0 %970
    %v972 = vsel %vm205, %v964, -inf
    %973 = vmax.xlane.f32.xlu0 %v972
    %v974 = vpop.xlane.xlu0 %973
    %v975 = vsub.f32 %v924, %v971
    %v976 = vsub.f32 %v964, %v974
    %v977 = vmul.f32 %v975, 1.442695
    %v978 = vpow.pop %v977
    %v979 = vmul.f32 %v976, 1.442695
    %v980 = vpow.pop %v979
    %v981 = vsel %vm205, %v978, 0.0
    %982 = vadd.xlane.f32.xlu0 %v981
    %v983 = vpop.xlane.xlu0 %982
    %v984 = vsel %vm205, %v980, 0.0
    %985 = vadd.xlane.f32.xlu0 %v984
    %v986 = vpop.xlane.xlu0 %985
    %v987 = vpack.c.bf16 %v978, %v978
    %v988 = vpack.c.bf16 %v980, %v980
    %v989 = vpack.c.bf16 %v684, %v680
    %v990 = vpack.c.bf16 %v694, %v690
    %v992 = vsel %vm307, %v987, 0
    %994 = vmatprep.subr.bf16.mxu0 0
    %995 = vmatpush1.bf16.msra.mxu0 %v989
    %996 = vmatprep.subr.bf16.mxu0 0
    %997 = vmatpush1.bf16.msra.mxu0 0
    %998 = vmatprep.subr.bf16.mxu0 0
    %999 = vmatpush1.bf16.msra.mxu0 0
    %1000 = vmatprep.subr.bf16.mxu0 0
    %1001 = vmatpush1.bf16.msra.mxu0 0
    %1002 = vmatprep.subr.bf16.mxu0 0
    %1003 = vmatpush1.bf16.msra.mxu0 0
    %1004 = vmatprep.subr.bf16.mxu0 0
    %1005 = vmatpush1.bf16.msra.mxu0 0
    %1006 = vmatprep.subr.bf16.mxu0 0
    %1007 = vmatpush1.bf16.msra.mxu0 0
    %1008 = vmatprep.subr.bf16.mxu0 0
    %1009 = vmatpush1.bf16.msra.mxu0 0
    %1010 = vmatprep.subr.bf16.mxu0 0
    %1011 = vmatpush1.bf16.msra.mxu0 0
    %1012 = vmatprep.subr.bf16.mxu0 0
    %1013 = vmatpush1.bf16.msra.mxu0 0
    %1014 = vmatprep.subr.bf16.mxu0 0
    %1015 = vmatpush1.bf16.msra.mxu0 0
    %1016 = vmatprep.subr.bf16.mxu0 0
    %1017 = vmatpush1.bf16.msra.mxu0 0
    %1018 = vmatprep.subr.bf16.mxu0 0
    %1019 = vmatpush1.bf16.msra.mxu0 0
    %1020 = vmatprep.subr.bf16.mxu0 0
    %1021 = vmatpush1.bf16.msra.mxu0 0
    %1022 = vmatprep.subr.bf16.mxu0 0
    %1023 = vmatpush1.bf16.msra.mxu0 0
    %1024 = vmatprep.subr.bf16.mxu0 0
    %1025 = vmatpush1.bf16.msra.mxu0 0
    %1026 = vmatprep.mubr.bf16.mxu0 0
    %1027 = vmatmul.mubr.bf16.gmra.mrb[0].mxu0 %v992
    %v1028 = vpop.f32.mrb[0].mxu0
    %v1029 = vadd.f32 0.0, %v1028
    %v1030 = vpop.f32.mrb[0].mxu0
    %v1031 = vpop.f32.mrb[0].mxu0
    %v1032 = vpop.f32.mrb[0].mxu0
    %1033 = vdwg.mxu0
    %v1035 = vsel %vm307, %v988, 0
    %1037 = vmatprep.subr.bf16.mxu0 0
    %1038 = vmatpush1.bf16.msra.mxu0 %v990
    %1039 = vmatprep.subr.bf16.mxu0 0
    %1040 = vmatpush1.bf16.msra.mxu0 0
    %1041 = vmatprep.subr.bf16.mxu0 0
    %1042 = vmatpush1.bf16.msra.mxu0 0
    %1043 = vmatprep.subr.bf16.mxu0 0
    %1044 = vmatpush1.bf16.msra.mxu0 0
    %1045 = vmatprep.subr.bf16.mxu0 0
    %1046 = vmatpush1.bf16.msra.mxu0 0
    %1047 = vmatprep.subr.bf16.mxu0 0
    %1048 = vmatpush1.bf16.msra.mxu0 0
    %1049 = vmatprep.subr.bf16.mxu0 0
    %1050 = vmatpush1.bf16.msra.mxu0 0
    %1051 = vmatprep.subr.bf16.mxu0 0
    %1052 = vmatpush1.bf16.msra.mxu0 0
    %1053 = vmatprep.subr.bf16.mxu0 0
    %1054 = vmatpush1.bf16.msra.mxu0 0
    %1055 = vmatprep.subr.bf16.mxu0 0
    %1056 = vmatpush1.bf16.msra.mxu0 0
    %1057 = vmatprep.subr.bf16.mxu0 0
    %1058 = vmatpush1.bf16.msra.mxu0 0
    %1059 = vmatprep.subr.bf16.mxu0 0
    %1060 = vmatpush1.bf16.msra.mxu0 0
    %1061 = vmatprep.subr.bf16.mxu0 0
    %1062 = vmatpush1.bf16.msra.mxu0 0
    %1063 = vmatprep.subr.bf16.mxu0 0
    %1064 = vmatpush1.bf16.msra.mxu0 0
    %1065 = vmatprep.subr.bf16.mxu0 0
    %1066 = vmatpush1.bf16.msra.mxu0 0
    %1067 = vmatprep.subr.bf16.mxu0 0
    %1068 = vmatpush1.bf16.msra.mxu0 0
    %1069 = vmatprep.mubr.bf16.mxu0 0
    %1070 = vmatmul.mubr.bf16.gmra.mrb[0].mxu0 %v1035
    %v1071 = vpop.f32.mrb[0].mxu0
    %v1072 = vadd.f32 0.0, %v1071
    %v1073 = vpop.f32.mrb[0].mxu0
    %v1074 = vpop.f32.mrb[0].mxu0
    %v1075 = vpop.f32.mrb[0].mxu0
    %1076 = vdwg.mxu0
    %v1077 = vrcp.pop %v983
    %v1078 = vrcp.pop %v986
    %v1079 = vmul.f32 %v1029, %v1077
    %v1080 = vmul.f32 %v1072, %v1078
    %v1081 = vadd.f32 %v1079, %v882
    %v1082 = vadd.f32 %v1080, %v882
    %v1083 = vmax.f32 %v1081, 0.0
    %v1084 = vmax.f32 %v1082, 0.0
    %1085 = vst [vmem:[#allocation17] sm:$0x3] %v1083
    %1086 = vst [vmem:[#allocation17 + $0x2] sm:$0x3] %v1084
    // Predicated region
    $region74: #{relevant_token_attention.1} parent=1 // pred_check
      _
    $region75: #{relevant_token_attention.1} parent=1 // pred_check_branch
      %1088 = sbr.rel (0) target = $region77
    $region76: #{relevant_token_attention.1} parent=1 // pred_region
      %s1090 = ssub.s32 64, 64
      %1091 = vsyncadd [#allocation4], %s1090
      %s1092 = sshll.u32 [#allocation17], 4
      %s1093 = int_to_ptr.vmem [resolvable:$true] %s1092
      %1098 = dma.vmem_to_hbm [thread:$0]  %s1093, 64, %s9, [#allocation4], 32, 32, 2
    $region77: #{relevant_token_attention.1} parent=1 // pred_fallthru
      _
    // Predicated region
    $region78: #{relevant_token_attention.1} parent=1 // pred_check
      _
    $region79: #{relevant_token_attention.1} parent=1 // pred_check_branch
      %1100 = sbr.rel (0) target = $region81
    $region80: #{relevant_token_attention.1} parent=1 // pred_region
      %1101 = dma.done [#allocation4], 64
    $region81: #{relevant_token_attention.1} parent=1 // pred_fallthru
      _
    %1102 = vsyncpa [#allocation3], 1
    %1103 = vsyncpa [#allocation6], 1
    %1104 = vsyncpa [#allocation9], 1
    %1105 = vsyncpa [#allocation12], 1
    %1106 = vsyncpa [#allocation15], 1
    %1107 = vsyncpa [#allocation4], 1

</llo_original>
